<compile_context>
chip_gen: v7x
topology: tpu7x:2x2x1
jax: 0.10.0
libtpu: 0.0.40
codegen_flags: <defaults>
</compile_context>

<pallas_src>
import functools

import jax
import jax.numpy as jnp
from jax import lax
from jax.experimental import pallas as pl
from jax.experimental.pallas import tpu as pltpu

_MIB = 1024 * 1024


def _round_up(v, m):
    return (v + m - 1) // m * m


def _vmem_budget_bytes():
    """Generation-aware (tile budget, scoped vmem limit) in bytes."""
    try:
        cap = int(pltpu.get_tpu_info().vmem_capacity_bytes)
    except Exception:
        cap = 64 * _MIB  # conservative fallback
    if cap >= 96 * _MIB:            # v5e / v6e: 128 MiB VMEM per core
        return 90 * _MIB, 100 * _MIB
    # v7x: 64 MiB per TensorCore; leave headroom for f32 intermediates and
    # compiler scratch.
    return 36 * _MIB, 44 * _MIB


def _pick_tn(N, B, feat_w, Fp, Fout, adj_itemsize, budget, weights_resident):
    """Node-tile size: largest multiple-of-8 divisor of N (<=256) that fits.

    Only divisors of N are considered so adj can be streamed directly with no
    padding copy.  Tiles giving >= 2 grid steps are preferred so v7x's two
    TensorCores both get work (the fused BN needs the full batch and the full
    feature width per node tile, so the node axis is the only shardable axis).
    """
    cands = [d for d in range(8, min(N, 256) + 1, 8) if N % d == 0]
    if not cands:
        # N not a multiple of 8: a single full-extent node tile is the only
        # copy-free option (block dim == full array dim is always legal).
        return N
    multi = [d for d in cands if N // d >= 2]
    pool = multi if multi else cands
    resident = B * N * feat_w * 4 + Fp * 4          # right operand + bias (1-buffered)
    if weights_resident:
        resident += feat_w * Fp * 4
    best = pool[0]
    for tn in pool:
        vmem = (2 * B * tn * N * adj_itemsize       # adj tile (double-buffered)
                + 2 * B * tn * Fout * 4             # out tile (double-buffered)
                + resident
                + B * tn * (2 * Fp + feat_w) * 4)   # live f32 intermediates
        if vmem <= budget:
            best = tn
    # TODO(synk): when the resident (B, N, feat_w) right operand alone exceeds
    # the budget (very large B*N), add an "arbitrary" K-tile grid axis over the
    # contraction with an f32 accumulator scratch instead of shrinking TN.
    return best


def _resident_spec(shape, index_map):
    """Single-buffered BlockSpec for grid-invariant operands (halves their VMEM)."""
    if hasattr(pl, "Buffered"):
        try:
            return pl.BlockSpec(shape, index_map, pipeline_mode=pl.Buffered(1))
        except TypeError:
            pass
    return pl.BlockSpec(shape, index_map)


def _finish(h, true_fout, use_bn):
    """L2-normalize + ReLU + fused training-mode BatchNorm1d(N) on (B, TN, Fp).

    Feature columns >= true_fout are exactly zero (zero weight columns / zero
    bias), so sums over the padded feature axis equal sums over real features.
    """
    # F.normalize(p=2, dim=-1, eps=1e-12): h / max(||h||, 1e-12)
    sumsq = jnp.sum(h * h, axis=-1, keepdims=True)
    h = h * lax.rsqrt(jnp.maximum(sumsq, 1e-24))
    # ReLU
    h = jnp.maximum(h, 0.0)
    if use_bn:
        # Fresh BatchNorm1d(N) in training mode: per-node stats over
        # (batch, feature), biased variance, eps=1e-5, gamma=1, beta=0.
        cnt = float(h.shape[0] * true_fout)
        s = jnp.sum(jnp.sum(h, axis=-1, keepdims=True), axis=0, keepdims=True)
        sq = jnp.sum(jnp.sum(h * h, axis=-1, keepdims=True), axis=0, keepdims=True)
        mean = s * (1.0 / cnt)
        var = jnp.maximum(sq * (1.0 / cnt) - mean * mean, 0.0)
        h = (h - mean) * lax.rsqrt(var + 1e-5)
    return h


def _sage_lin_first_kernel(adj_ref, xw_ref, b_ref, out_ref, *, true_fout, use_bn):
    # adj_ref: (B, TN, N), xw_ref: (B, N, Fp) = x @ W.T (lane-padded), b_ref: (1, Fp)
    h = jnp.einsum('btn,bnf->btf', adj_ref[...], xw_ref[...],
                   preferred_element_type=jnp.float32)
    h = h + b_ref[...]
    h = _finish(h, true_fout, use_bn)
    out_ref[...] = h[:, :, :true_fout].astype(out_ref.dtype)


def _sage_agg_first_kernel(adj_ref, x_ref, wt_ref, b_ref, out_ref, *,
                           true_fout, use_bn):
    # adj_ref: (B, TN, N), x_ref: (B, N, Fin_p), wt_ref: (Fin_p, Fp), b_ref: (1, Fp)
    B, TN, _ = adj_ref.shape
    Fp = wt_ref.shape[1]
    hn = jnp.einsum('btn,bnf->btf', adj_ref[...], x_ref[...],
                    preferred_element_type=jnp.float32)
    h = jnp.dot(hn.reshape(B * TN, hn.shape[-1]), wt_ref[...],
                preferred_element_type=jnp.float32).reshape(B, TN, Fp)
    h = h + b_ref[...]
    h = _finish(h, true_fout, use_bn)
    out_ref[...] = h[:, :, :true_fout].astype(out_ref.dtype)


def batched_graphsage(x, adj, w, b, *, add_self=False, mean=False,
                      use_bn=True, mask=None):
    """x: (B, N, Fin), adj: (B, N, N), w: (Fout, Fin), b: (Fout,) -> (B, N, Fout)."""
    x = x.astype(jnp.float32)
    if not jnp.issubdtype(adj.dtype, jnp.floating):
        adj = adj.astype(jnp.float32)
    B, N, Fin = x.shape
    Fout = w.shape[0]

    # glue (plain JAX): optional adjacency preprocessing
    if add_self:
        # NOTE: the PyTorch module uses eye(adj.size(0)); for a (B, N, N) adj
        # the only consistent interpretation is eye(N), used here.
        adj = adj + jnp.eye(N, dtype=adj.dtype)[None]
    if mean:
        adj = adj / jnp.sum(adj, axis=1, keepdims=True)
    # adj is streamed into the kernel as-is (no pad pass, no dtype-cast pass
    # over the dominant (B, N, N) operand): the aggregation is HBM-bound on adj.

    # Lane-padded output-feature width for the linear; padded weight columns
    # and bias entries are zero, so padded h columns are exactly zero.
    Fp = _round_up(Fout, 128)
    Fin_p = _round_up(Fin, 128)
    # Contract the O(N^2) aggregation against the narrower lane-padded width.
    linear_first = Fp <= Fin_p
    feat_w = Fp if linear_first else Fin_p

    budget, vmem_limit = _vmem_budget_bytes()
    adj_itemsize = jnp.dtype(adj.dtype).itemsize
    TN = _pick_tn(N, B, feat_w, Fp, Fout, adj_itemsize, budget,
                  weights_resident=not linear_first)
    grid = (N // TN,)

    cparams = pltpu.CompilerParams(
        dimension_semantics=("parallel",),
        vmem_limit_bytes=vmem_limit,
    )
    # The kernel writes (B, N, Fout) directly (full-extent last dim): no
    # lane-padded slab in HBM and no wrapper-side slice pass; output stores are
    # tiny next to the adj reads.
    out_shape = jax.ShapeDtypeStruct((B, N, Fout), jnp.float32)
    adj_spec = pl.BlockSpec((B, TN, N), lambda i: (0, i, 0))
    out_spec = pl.BlockSpec((B, TN, Fout), lambda i: (0, i, 0))
    bp = jnp.zeros((1, Fp), jnp.float32).at[0, :Fout].set(b.astype(jnp.float32))
    b_spec = _resident_spec((1, Fp), lambda i: (0, 0))

    if linear_first:
        # h = adj @ (x @ W.T) + b ; the lane-dense pre-linear runs in plain XLA
        # over the (much smaller) x operand.
        wt = jnp.zeros((Fin, Fp), jnp.float32).at[:, :Fout].set(
            w.astype(jnp.float32).T)
        xw = (x.reshape(B * N, Fin) @ wt).reshape(B, N, Fp)
        h = pl.pallas_call(
            functools.partial(_sage_lin_first_kernel,
                              true_fout=Fout, use_bn=use_bn),
            out_shape=out_shape,
            grid_spec=pltpu.PrefetchScalarGridSpec(
                num_scalar_prefetch=0,
                grid=grid,
                in_specs=[adj_spec,
                          _resident_spec((B, N, Fp), lambda i: (0, 0, 0)),
                          b_spec],
                out_specs=out_spec),
            compiler_params=cparams,
        )(adj, xw, bp)
    else:
        # h = (adj @ x) @ W.T + b ; Fin is zero-padded to a lane multiple so
        # both MXU matmuls are lane-dense (padding x is cheap next to adj).
        if Fin_p != Fin:
            x_p = jnp.zeros((B, N, Fin_p), jnp.float32).at[:, :, :Fin].set(x)
        else:
            x_p = x
        wt = jnp.zeros((Fin_p, Fp), jnp.float32).at[:Fin, :Fout].set(
            w.astype(jnp.float32).T)
        h = pl.pallas_call(
            functools.partial(_sage_agg_first_kernel,
                              true_fout=Fout, use_bn=use_bn),
            out_shape=out_shape,
            grid_spec=pltpu.PrefetchScalarGridSpec(
                num_scalar_prefetch=0,
                grid=grid,
                in_specs=[adj_spec,
                          _resident_spec((B, N, Fin_p), lambda i: (0, 0, 0)),
                          _resident_spec((Fin_p, Fp), lambda i: (0, 0)),
                          b_spec],
                out_specs=out_spec),
            compiler_params=cparams,
        )(adj, x_p, wt, bp)

    if mask is not None:
        # glue: mask is (B, N), broadcast over the feature dim
        h = h * mask[:, :, None].astype(h.dtype)
    return h


def _init_params(key, infeat, outfeat):
    # xavier_uniform_ with gain = calculate_gain('relu') = sqrt(2)
    kw, kb = jax.random.split(key)
    gain = jnp.sqrt(2.0)
    limit = gain * jnp.sqrt(6.0 / (infeat + outfeat))
    w = jax.random.uniform(kw, (outfeat, infeat), jnp.float32, -limit, limit)
    # nn.Linear default bias init: U(-1/sqrt(infeat), 1/sqrt(infeat))
    bound = 1.0 / jnp.sqrt(infeat)
    b = jax.random.uniform(kb, (outfeat,), jnp.float32, -bound, bound)
    return w, b


if __name__ == "__main__":
    key = jax.random.PRNGKey(0)
    k_x, k_adj, k_p = jax.random.split(key, 3)

    B, N, Fin, Fout = 2, 8, 16, 32
    x = jax.random.normal(k_x, (B, N, Fin), jnp.float32)
    # simple dense 0/1 adjacency with self loops
    adj = (jax.random.uniform(k_adj, (B, N, N)) > 0.5).astype(jnp.float32)
    adj = adj + jnp.eye(N, dtype=jnp.float32)[None]

    w, b = _init_params(k_p, Fin, Fout)

    out = batched_graphsage(x, adj, w, b)
    jax.block_until_ready(out)
    assert out.shape == (B, N, Fout)
    assert bool(jnp.all(jnp.isfinite(out)))
    print("KERNEL_OK")
</pallas_src>

<mosaic_0001>
module attributes {stable_mosaic.version = 11 : i64} {
  func.func @_sage_lin_first_kernel(%arg0: i32, %arg1: memref<2x8x8xf32, #tpu.memory_space<vmem>>, %arg2: memref<2x8x128xf32, #tpu.memory_space<vmem>>, %arg3: memref<1x128xf32, #tpu.memory_space<vmem>>, %arg4: memref<2x8x32xf32, #tpu.memory_space<vmem>>) attributes {dimension_semantics = [#tpu.dimension_semantics<parallel>], iteration_bounds = array<i64: 1>, scalar_prefetch = 0 : i64, scratch_operands = 0 : i64, tpu.core_type = #tpu.core_type<tc>, window_params = [{transform_indices = @transform_0, window_bounds = array<i64: 2, 8, 8>}, {pipeline_mode = #tpu.pipeline_mode<synchronous>, transform_indices = @transform_1, window_bounds = array<i64: 2, 8, 128>}, {pipeline_mode = #tpu.pipeline_mode<synchronous>, transform_indices = @transform_2, window_bounds = array<i64: 1, 128>}, {transform_indices = @transform_3, window_bounds = array<i64: 2, 8, 32>}]} {
    %c0 = arith.constant 0 : index
    %c0_0 = arith.constant 0 : index
    %c0_1 = arith.constant 0 : index
    %0 = vector.load %arg1[%c0, %c0_0, %c0_1] : memref<2x8x8xf32, #tpu.memory_space<vmem>>, vector<2x8x8xf32>
    %c0_2 = arith.constant 0 : index
    %c0_3 = arith.constant 0 : index
    %c0_4 = arith.constant 0 : index
    %1 = vector.load %arg2[%c0_2, %c0_3, %c0_4] : memref<2x8x128xf32, #tpu.memory_space<vmem>>, vector<2x8x128xf32>
    "tpu.trace_start"() <{level = 10 : i32, message = "btn,bnf->btf"}> : () -> ()
    %cst = arith.constant dense<0.000000e+00> : vector<2x8x128xf32>
    %2 = tpu.matmul %0, %1, %cst {dimension_numbers = #tpu.dot_dimension_numbers<[2], [1], [1], [2], [0, 0, 0, 1, 1, 2], [0], [0]>} : vector<2x8x8xf32>, vector<2x8x128xf32>, vector<2x8x128xf32> -> vector<2x8x128xf32>
    "tpu.trace_stop"() : () -> ()
    %c0_5 = arith.constant 0 : index
    %c0_6 = arith.constant 0 : index
    %3 = vector.load %arg3[%c0_5, %c0_6] : memref<1x128xf32, #tpu.memory_space<vmem>>, vector<1x128xf32>
    %4 = vector.shape_cast %3 : vector<1x128xf32> to vector<1x1x128xf32>
    %5 = vector.broadcast %4 : vector<1x1x128xf32> to vector<2x8x128xf32>
    %6 = arith.addf %2, %5 : vector<2x8x128xf32>
    %7 = arith.mulf %6, %6 : vector<2x8x128xf32>
    %cst_7 = arith.constant dense<0.000000e+00> : vector<2x8xf32>
    %8 = vector.multi_reduction <add>, %7, %cst_7 [2] : vector<2x8x128xf32> to vector<2x8xf32>
    %9 = vector.shape_cast %8 : vector<2x8xf32> to vector<2x8x1xf32>
    %cst_8 = arith.constant 1.000000e-24 : f32
    %10 = vector.broadcast %cst_8 : f32 to vector<2x8x1xf32>
    %11 = arith.maximumf %9, %10 : vector<2x8x1xf32>
    %12 = math.rsqrt %11 : vector<2x8x1xf32>
    %13 = vector.broadcast %12 : vector<2x8x1xf32> to vector<2x8x128xf32>
    %14 = arith.mulf %6, %13 : vector<2x8x128xf32>
    %cst_9 = arith.constant 0.000000e+00 : f32
    %15 = vector.broadcast %cst_9 : f32 to vector<2x8x128xf32>
    %16 = arith.maximumf %14, %15 : vector<2x8x128xf32>
    %cst_10 = arith.constant dense<0.000000e+00> : vector<2x8xf32>
    %17 = vector.multi_reduction <add>, %16, %cst_10 [2] : vector<2x8x128xf32> to vector<2x8xf32>
    %18 = vector.shape_cast %17 : vector<2x8xf32> to vector<2x8x1xf32>
    %cst_11 = arith.constant dense<0.000000e+00> : vector<8x1xf32>
    %19 = vector.multi_reduction <add>, %18, %cst_11 [0] : vector<2x8x1xf32> to vector<8x1xf32>
    %20 = vector.shape_cast %19 : vector<8x1xf32> to vector<1x8x1xf32>
    %21 = arith.mulf %16, %16 : vector<2x8x128xf32>
    %cst_12 = arith.constant dense<0.000000e+00> : vector<2x8xf32>
    %22 = vector.multi_reduction <add>, %21, %cst_12 [2] : vector<2x8x128xf32> to vector<2x8xf32>
    %23 = vector.shape_cast %22 : vector<2x8xf32> to vector<2x8x1xf32>
    %cst_13 = arith.constant dense<0.000000e+00> : vector<8x1xf32>
    %24 = vector.multi_reduction <add>, %23, %cst_13 [0] : vector<2x8x1xf32> to vector<8x1xf32>
    %25 = vector.shape_cast %24 : vector<8x1xf32> to vector<1x8x1xf32>
    %cst_14 = arith.constant 1.562500e-02 : f32
    %26 = vector.broadcast %cst_14 : f32 to vector<1x8x1xf32>
    %27 = arith.mulf %20, %26 : vector<1x8x1xf32>
    %cst_15 = arith.constant 1.562500e-02 : f32
    %28 = vector.broadcast %cst_15 : f32 to vector<1x8x1xf32>
    %29 = arith.mulf %25, %28 : vector<1x8x1xf32>
    %30 = arith.mulf %27, %27 : vector<1x8x1xf32>
    %31 = arith.subf %29, %30 : vector<1x8x1xf32>
    %cst_16 = arith.constant 0.000000e+00 : f32
    %32 = vector.broadcast %cst_16 : f32 to vector<1x8x1xf32>
    %33 = arith.maximumf %31, %32 : vector<1x8x1xf32>
    %34 = vector.broadcast %27 : vector<1x8x1xf32> to vector<2x8x128xf32>
    %35 = arith.subf %16, %34 : vector<2x8x128xf32>
    %cst_17 = arith.constant 9.99999974E-6 : f32
    %36 = vector.broadcast %cst_17 : f32 to vector<1x8x1xf32>
    %37 = arith.addf %33, %36 : vector<1x8x1xf32>
    %38 = math.rsqrt %37 : vector<1x8x1xf32>
    %39 = vector.broadcast %38 : vector<1x8x1xf32> to vector<2x8x128xf32>
    %40 = arith.mulf %35, %39 : vector<2x8x128xf32>
    %41 = vector.extract_strided_slice %40 {offsets = [0, 0, 0], sizes = [2, 8, 32], strides = [1, 1, 1]} : vector<2x8x128xf32> to vector<2x8x32xf32>
    %c0_18 = arith.constant 0 : index
    %c0_19 = arith.constant 0 : index
    %c0_20 = arith.constant 0 : index
    %42 = vector.load %arg4[%c0_18, %c0_19, %c0_20] : memref<2x8x32xf32, #tpu.memory_space<vmem>>, vector<2x8x32xf32>
    tpu.vector_store %arg4[%c0_18, %c0_19, %c0_20], %41 {strides = array<i32>} : memref<2x8x32xf32, #tpu.memory_space<vmem>>, vector<2x8x32xf32>,
    return
  }
  func.func @transform_0(%arg0: i32) -> (i32, i32, i32) {
    %c0_i32 = arith.constant 0 : i32
    %c0_i32_0 = arith.constant 0 : i32
    %c0_i32_1 = arith.constant 0 : i32
    return %c0_i32, %arg0, %c0_i32_0 : i32, i32, i32
  }
  func.func @transform_1(%arg0: i32) -> (i32, i32, i32) {
    %c0_i32 = arith.constant 0 : i32
    %c0_i32_0 = arith.constant 0 : i32
    %c0_i32_1 = arith.constant 0 : i32
    %c0_i32_2 = arith.constant 0 : i32
    return %c0_i32, %c0_i32_0, %c0_i32_1 : i32, i32, i32
  }
  func.func @transform_2(%arg0: i32) -> (i32, i32) {
    %c0_i32 = arith.constant 0 : i32
    %c0_i32_0 = arith.constant 0 : i32
    %c0_i32_1 = arith.constant 0 : i32
    return %c0_i32, %c0_i32_0 : i32, i32
  }
  func.func @transform_3(%arg0: i32) -> (i32, i32, i32) {
    %c0_i32 = arith.constant 0 : i32
    %c0_i32_0 = arith.constant 0 : i32
    %c0_i32_1 = arith.constant 0 : i32
    return %c0_i32, %arg0, %c0_i32_0 : i32, i32, i32
  }
}

</mosaic_0001>

<llo_original>
// kernel: tpu_custom_call.1
$region0: #{tpu_custom_call.1}
  #allocation0 [shape = 'u32[]', space=smem, size = 0x4, offset = 0x4, fixed_abs, tag = 'smem constant byte address 0x4 - core index']
  #allocation1 [shape = 'u32[144,128]{1,0:T(1,128)}', space=vmem, size = 0x12000, scoped, tag = 'internal scratch']
  %s0 = inlined_call_operand.hbm [shape: f32[2,8,8], index: 0, kind: input, shape index: {}]
  %s1 = inlined_call_operand.hbm [shape: f32[2,8,128], index: 1, kind: input, shape index: {}]
  %s2 = inlined_call_operand.vmem [shape: f32[1,128], index: 2, kind: input, shape index: {}]
  %s3 = inlined_call_operand.hbm [shape: f32[2,8,32], index: 3, kind: output, shape index: {}]
  %s4 = sld [smem:[#allocation0]]
  $region30: #{tpu_custom_call.1} parent=0
    _
  %s6 = ssub.s32 1, %s4
  %s7 = scalar_select 0, %s6, %s4
  $region1: #{tpu_custom_call.1} parent=0
    #allocation2 [shape = 'u8[8192]{0}', space=vmem, size = 0x2000, scoped, tag = 'input window, operand 0, single buffered']
    #allocation3 [shape = 's32[1]{0}', space=sflag, size = 0x4, scoped, tag = 'scoped memory for tpu_custom_call.1']
    #allocation4 [shape = 's32[1]{0}', space=sflag, size = 0x4, scoped, tag = 'scoped memory for tpu_custom_call.1']
    #allocation5 [shape = 'u8[8192]{0}', space=vmem, size = 0x2000, scoped, tag = 'input window, operand 1, single buffered']
    #allocation6 [shape = 's32[1]{0}', space=sflag, size = 0x4, scoped, tag = 'scoped memory for tpu_custom_call.1']
    #allocation7 [shape = 'u8[8192]{0}', space=vmem, size = 0x2000, scoped, tag = 'output window, operand 0, single buffered']
    %8 = vsyncpa [#allocation3], 0
    %9 = vsyncpa [#allocation6], 0
    %10 = vsyncpa [#allocation4], 0
    // Predicated region
    $region2: #{tpu_custom_call.1} parent=1 // pred_check
      _
    $region3: #{tpu_custom_call.1} parent=1 // pred_check_branch
      %12 = sbr.rel (0) target = $region5
    $region4: #{tpu_custom_call.1} parent=1 // pred_region
      %s14 = ssub.s32 256, 256
      %15 = vsyncadd [#allocation3], %s14
      %s16 = sshll.u32 [#allocation2], 4
      %s17 = int_to_ptr.vmem [resolvable:$true] %s16
      %22 = dma.hbm_to_vmem [thread:$0]  %s0, 256, %s17, [#allocation3], 128, 128, 8
    $region5: #{tpu_custom_call.1} parent=1 // pred_fallthru
      _
    // Predicated region
    $region6: #{tpu_custom_call.1} parent=1 // pred_check
      _
    $region7: #{tpu_custom_call.1} parent=1 // pred_check_branch
      %24 = sbr.rel (0) target = $region9
    $region8: #{tpu_custom_call.1} parent=1 // pred_region
      %s26 = ssub.s32 256, 256
      %27 = vsyncadd [#allocation6], %s26
      %s28 = sshll.u32 [#allocation5], 4
      %s29 = int_to_ptr.vmem [resolvable:$true] %s28
      %34 = dma.hbm_to_vmem [thread:$0]  %s1, 256, %s29, [#allocation6], 128, 128, 8
    $region9: #{tpu_custom_call.1} parent=1 // pred_fallthru
      _
    // Predicated region
    $region10: #{tpu_custom_call.1} parent=1 // pred_check
      _
    $region11: #{tpu_custom_call.1} parent=1 // pred_check_branch
      %36 = sbr.rel (0) target = $region13
    $region12: #{tpu_custom_call.1} parent=1 // pred_region
      _
    $region13: #{tpu_custom_call.1} parent=1 // pred_fallthru
      _
    // Predicated region
    $region14: #{tpu_custom_call.1} parent=1 // pred_check
      _
    $region15: #{tpu_custom_call.1} parent=1 // pred_check_branch
      %38 = sbr.rel (0) target = $region17
    $region16: #{tpu_custom_call.1} parent=1 // pred_region
      %39 = dma.done [#allocation3], 256
    $region17: #{tpu_custom_call.1} parent=1 // pred_fallthru
      _
    // Predicated region
    $region18: #{tpu_custom_call.1} parent=1 // pred_check
      _
    $region19: #{tpu_custom_call.1} parent=1 // pred_check_branch
      %41 = sbr.rel (0) target = $region21
    $region20: #{tpu_custom_call.1} parent=1 // pred_region
      %42 = dma.done [#allocation6], 256
    $region21: #{tpu_custom_call.1} parent=1 // pred_fallthru
      _
    %v43 = vld [vmem:[#allocation2] sm:$0xff]
    %v44 = vld [vmem:[#allocation2 + $0x8] sm:$0xff]
    %v45 = vld [vmem:[#allocation5] sm:$0xff]
    %v46 = vld [vmem:[#allocation5 + $0x8] sm:$0xff]
    %v47 = vld [vmem:[%s2] sm:$0x1]
    %v49 = vlaneseq
    %v50 = vshrl.u32 %v49, 7
    %v51 = vsub.s32 0, %v50
    %v52 = vrot.slane %v47, %v51
    %vm54 = vcmask 64512
    %v56 = vsel %vm54, %v43, 0
    %58 = vmatprep.subr.mxu0 0.0
    %59 = vmatpush1.msra.mxu0 %v45
    %60 = vmatprep.subr.mxu0 0.0
    %61 = vmatpush1.msra.mxu0 0.0
    %62 = vmatprep.subr.mxu0 0.0
    %63 = vmatpush1.msra.mxu0 0.0
    %64 = vmatprep.subr.mxu0 0.0
    %65 = vmatpush1.msra.mxu0 0.0
    %66 = vmatprep.subr.mxu0 0.0
    %67 = vmatpush1.msra.mxu0 0.0
    %68 = vmatprep.subr.mxu0 0.0
    %69 = vmatpush1.msra.mxu0 0.0
    %70 = vmatprep.subr.mxu0 0.0
    %71 = vmatpush1.msra.mxu0 0.0
    %72 = vmatprep.subr.mxu0 0.0
    %73 = vmatpush1.msra.mxu0 0.0
    %74 = vmatprep.subr.mxu0 0.0
    %75 = vmatpush1.msra.mxu0 0.0
    %76 = vmatprep.subr.mxu0 0.0
    %77 = vmatpush1.msra.mxu0 0.0
    %78 = vmatprep.subr.mxu0 0.0
    %79 = vmatpush1.msra.mxu0 0.0
    %80 = vmatprep.subr.mxu0 0.0
    %81 = vmatpush1.msra.mxu0 0.0
    %82 = vmatprep.subr.mxu0 0.0
    %83 = vmatpush1.msra.mxu0 0.0
    %84 = vmatprep.subr.mxu0 0.0
    %85 = vmatpush1.msra.mxu0 0.0
    %86 = vmatprep.subr.mxu0 0.0
    %87 = vmatpush1.msra.mxu0 0.0
    %88 = vmatprep.subr.mxu0 0.0
    %89 = vmatpush1.msra.mxu0 0.0
    %90 = vmatprep.subr.mxu0 0.0
    %91 = vmatpush1.msra.mxu0 0.0
    %92 = vmatprep.subr.mxu0 0.0
    %93 = vmatpush1.msra.mxu0 0.0
    %94 = vmatprep.subr.mxu0 0.0
    %95 = vmatpush1.msra.mxu0 0.0
    %96 = vmatprep.subr.mxu0 0.0
    %97 = vmatpush1.msra.mxu0 0.0
    %98 = vmatprep.subr.mxu0 0.0
    %99 = vmatpush1.msra.mxu0 0.0
    %100 = vmatprep.subr.mxu0 0.0
    %101 = vmatpush1.msra.mxu0 0.0
    %102 = vmatprep.subr.mxu0 0.0
    %103 = vmatpush1.msra.mxu0 0.0
    %104 = vmatprep.subr.mxu0 0.0
    %105 = vmatpush1.msra.mxu0 0.0
    %106 = vmatprep.subr.mxu0 0.0
    %107 = vmatpush1.msra.mxu0 0.0
    %108 = vmatprep.subr.mxu0 0.0
    %109 = vmatpush1.msra.mxu0 0.0
    %110 = vmatprep.subr.mxu0 0.0
    %111 = vmatpush1.msra.mxu0 0.0
    %112 = vmatprep.subr.mxu0 0.0
    %113 = vmatpush1.msra.mxu0 0.0
    %114 = vmatprep.subr.mxu0 0.0
    %115 = vmatpush1.msra.mxu0 0.0
    %116 = vmatprep.subr.mxu0 0.0
    %117 = vmatpush1.msra.mxu0 0.0
    %118 = vmatprep.subr.mxu0 0.0
    %119 = vmatpush1.msra.mxu0 0.0
    %120 = vmatprep.subr.mxu0 0.0
    %121 = vmatpush1.msra.mxu0 0.0
    %122 = vmatprep.mubr.f32.mxu0 0.0
    %123 = vmatmul.mubr.f32.gmra.mrb[0].mxu0 %v56
    %v124 = vpop.f32.mrb[0].mxu0
    %v125 = vadd.f32 %v52, %v124
    %v126 = vpop.f32.mrb[0].mxu0
    %127 = vdwg.mxu0
    %v129 = vsel %vm54, %v44, 0
    %131 = vmatprep.subr.mxu0 0.0
    %132 = vmatpush1.msra.mxu0 %v46
    %133 = vmatprep.subr.mxu0 0.0
    %134 = vmatpush1.msra.mxu0 0.0
    %135 = vmatprep.subr.mxu0 0.0
    %136 = vmatpush1.msra.mxu0 0.0
    %137 = vmatprep.subr.mxu0 0.0
    %138 = vmatpush1.msra.mxu0 0.0
    %139 = vmatprep.subr.mxu0 0.0
    %140 = vmatpush1.msra.mxu0 0.0
    %141 = vmatprep.subr.mxu0 0.0
    %142 = vmatpush1.msra.mxu0 0.0
    %143 = vmatprep.subr.mxu0 0.0
    %144 = vmatpush1.msra.mxu0 0.0
    %145 = vmatprep.subr.mxu0 0.0
    %146 = vmatpush1.msra.mxu0 0.0
    %147 = vmatprep.subr.mxu0 0.0
    %148 = vmatpush1.msra.mxu0 0.0
    %149 = vmatprep.subr.mxu0 0.0
    %150 = vmatpush1.msra.mxu0 0.0
    %151 = vmatprep.subr.mxu0 0.0
    %152 = vmatpush1.msra.mxu0 0.0
    %153 = vmatprep.subr.mxu0 0.0
    %154 = vmatpush1.msra.mxu0 0.0
    %155 = vmatprep.subr.mxu0 0.0
    %156 = vmatpush1.msra.mxu0 0.0
    %157 = vmatprep.subr.mxu0 0.0
    %158 = vmatpush1.msra.mxu0 0.0
    %159 = vmatprep.subr.mxu0 0.0
    %160 = vmatpush1.msra.mxu0 0.0
    %161 = vmatprep.subr.mxu0 0.0
    %162 = vmatpush1.msra.mxu0 0.0
    %163 = vmatprep.subr.mxu0 0.0
    %164 = vmatpush1.msra.mxu0 0.0
    %165 = vmatprep.subr.mxu0 0.0
    %166 = vmatpush1.msra.mxu0 0.0
    %167 = vmatprep.subr.mxu0 0.0
    %168 = vmatpush1.msra.mxu0 0.0
    %169 = vmatprep.subr.mxu0 0.0
    %170 = vmatpush1.msra.mxu0 0.0
    %171 = vmatprep.subr.mxu0 0.0
    %172 = vmatpush1.msra.mxu0 0.0
    %173 = vmatprep.subr.mxu0 0.0
    %174 = vmatpush1.msra.mxu0 0.0
    %175 = vmatprep.subr.mxu0 0.0
    %176 = vmatpush1.msra.mxu0 0.0
    %177 = vmatprep.subr.mxu0 0.0
    %178 = vmatpush1.msra.mxu0 0.0
    %179 = vmatprep.subr.mxu0 0.0
    %180 = vmatpush1.msra.mxu0 0.0
    %181 = vmatprep.subr.mxu0 0.0
    %182 = vmatpush1.msra.mxu0 0.0
    %183 = vmatprep.subr.mxu0 0.0
    %184 = vmatpush1.msra.mxu0 0.0
    %185 = vmatprep.subr.mxu0 0.0
    %186 = vmatpush1.msra.mxu0 0.0
    %187 = vmatprep.subr.mxu0 0.0
    %188 = vmatpush1.msra.mxu0 0.0
    %189 = vmatprep.subr.mxu0 0.0
    %190 = vmatpush1.msra.mxu0 0.0
    %191 = vmatprep.subr.mxu0 0.0
    %192 = vmatpush1.msra.mxu0 0.0
    %193 = vmatprep.subr.mxu0 0.0
    %194 = vmatpush1.msra.mxu0 0.0
    %195 = vmatprep.mubr.f32.mxu0 0.0
    %196 = vmatmul.mubr.f32.gmra.mrb[0].mxu0 %v129
    %v197 = vpop.f32.mrb[0].mxu0
    %v198 = vadd.f32 %v52, %v197
    %v199 = vpop.f32.mrb[0].mxu0
    %200 = vdwg.mxu0
    %v201 = vmul.f32 %v125, %v125
    %v202 = vmul.f32 %v198, %v198
    %203 = vadd.xlane.f32.xlu0 %v201
    %v204 = vpop.xlane.xlu0 %203
    %205 = vadd.xlane.f32.xlu0 %v202
    %v206 = vpop.xlane.xlu0 %205
    %v207 = vmax.f32 %v204, 1e-24
    %v208 = vmax.f32 %v206, 1e-24
    %v209 = vrsqrt.pop %v207
    %v210 = vrsqrt.pop %v208
    %v211 = vmul.f32 %v125, %v209
    %v212 = vmul.f32 %v198, %v210
    %v213 = vmax.f32 %v211, 0.0
    %v214 = vmax.f32 %v212, 0.0
    %215 = vadd.xlane.f32.xlu0 %v213
    %v216 = vpop.xlane.xlu0 %215
    %217 = vadd.xlane.f32.xlu0 %v214
    %v218 = vpop.xlane.xlu0 %217
    %v219 = vadd.f32 %v216, %v218
    %v220 = vmul.f32 %v213, %v213
    %v221 = vmul.f32 %v214, %v214
    %222 = vadd.xlane.f32.xlu0 %v220
    %v223 = vpop.xlane.xlu0 %222
    %224 = vadd.xlane.f32.xlu0 %v221
    %v225 = vpop.xlane.xlu0 %224
    %v226 = vadd.f32 %v223, %v225
    %v227 = vmul.f32 %v219, 0.015625
    %v228 = vmul.f32 %v226, 0.015625
    %v229 = vmul.f32 %v227, %v227
    %v230 = vsub.f32 %v228, %v229
    %v231 = vmax.f32 %v230, 0.0
    %v232 = vsub.f32 %v213, %v227
    %v233 = vsub.f32 %v214, %v227
    %v234 = vadd.f32 %v231, 1e-05
    %v235 = vrsqrt.pop %v234
    %v236 = vmul.f32 %v232, %v235
    %v237 = vmul.f32 %v233, %v235
    %vm238 = vcmask 261120
    %239 = vst.msk [vmem:[#allocation7] sm:$0xff] %vm238, %v236
    %240 = vst.msk [vmem:[#allocation7 + $0x8] sm:$0xff] %vm238, %v237
    // Predicated region
    $region22: #{tpu_custom_call.1} parent=1 // pred_check
      _
    $region23: #{tpu_custom_call.1} parent=1 // pred_check_branch
      %242 = sbr.rel (0) target = $region25
    $region24: #{tpu_custom_call.1} parent=1 // pred_region
      %s244 = ssub.s32 256, 256
      %245 = vsyncadd [#allocation4], %s244
      %s246 = sshll.u32 [#allocation7], 4
      %s247 = int_to_ptr.vmem [resolvable:$true] %s246
      %252 = dma.vmem_to_hbm [thread:$0]  %s247, 256, %s3, [#allocation4], 128, 128, 8
    $region25: #{tpu_custom_call.1} parent=1 // pred_fallthru
      _
    // Predicated region
    $region26: #{tpu_custom_call.1} parent=1 // pred_check
      _
    $region27: #{tpu_custom_call.1} parent=1 // pred_check_branch
      %254 = sbr.rel (0) target = $region29
    $region28: #{tpu_custom_call.1} parent=1 // pred_region
      %255 = dma.done [#allocation4], 256
    $region29: #{tpu_custom_call.1} parent=1 // pred_fallthru
      _
    %256 = vsyncpa [#allocation3], 1
    %257 = vsyncpa [#allocation6], 1
    %258 = vsyncpa [#allocation4], 1

</llo_original>
